<compile_context>
chip_gen: v7x
topology: tpu7x:2x2x1
jax: 0.10.0
libtpu: 0.0.40
codegen_flags: <defaults>
</compile_context>

<pallas_src>
import numpy as np
import jax
import jax.numpy as jnp
from jax.experimental import pallas as pl
from jax.experimental.pallas import tpu as pltpu


def _round_up(x, m):
    return ((x + m - 1) // m) * m


def _vmem_capacity_bytes():
    try:
        return int(pltpu.get_tpu_info().vmem_capacity_bytes)
    except Exception:
        return 64 << 20          # conservative default (v7x per-TC VMEM)


def _convtr_tile_kernel(halo_ref, x_ref, w_ref, b_ref, o_ref):
    """One (batch, L-tile) of the transposed conv; taps folded into the contraction.

    halo_ref: (1, Hh, Cin)    last Hh input rows preceding this tile (same HBM array as x)
    x_ref:    (1, T, Cin)     input tile, channels last
    w_ref:    (Mr*Cin, SCp)   im2col weights, row = m*Cin + ci, col = r*Cout + co (lane-padded)
    b_ref:    (1, SCp)        bias tiled over stride phases (lane padding zeroed)
    o_ref:    (1, T, SCp)     lane-dense, phase-interleaved output tile
    """
    T = x_ref.shape[1]
    Hh = halo_ref.shape[1]
    Cin = x_ref.shape[2]
    Mr = w_ref.shape[0] // Cin

    x = x_ref[0]                                                      # (T, Cin)
    halo = halo_ref[0]                                                # (Hh, Cin)
    # Tile 0 has no predecessor: its halo block is clamped to block 0 -> zero it.
    halo = jnp.where(pl.program_id(1) == 0, jnp.zeros_like(halo), halo)

    # Extended window; Hh and T are multiples of the sublane granule -> aligned copy.
    # TODO(synk): a pl.Element overlapping-window in_spec would make the halo arrive
    # in the same DMA as the tile and drop this concat entirely.
    x_ext = jnp.concatenate([halo, x], axis=0)                        # (Hh+T, Cin)

    # im2col over the Mr taps: output row q needs input rows q-m, so tap m is the
    # window shifted by m.  One fused MXU matmul, contraction depth Mr*Cin; no f32
    # intermediate slab, no overlap-add epilogue.
    if Mr == 1:
        lhs = x_ext[Hh:Hh + T, :]
    else:
        lhs = jnp.concatenate(
            [x_ext[Hh - m:Hh - m + T, :] for m in range(Mr)], axis=1)  # (T, Mr*Cin)

    acc = jnp.dot(lhs, w_ref[...], preferred_element_type=jnp.float32)  # (T, SCp)
    o_ref[0] = (acc + b_ref[...]).astype(o_ref.dtype)


def norm_conv_transpose1d(x_ncl, weight, bias, *, stride, padding=0,
                          tile_l=None, compute_dtype=jnp.bfloat16, max_tile=1024):
    """ConvTranspose1d (groups=1, dilation=1, output_padding=0) + Identity norm."""
    B, Cin, L = x_ncl.shape
    assert weight.shape[0] == Cin
    _, Cout, K = weight.shape
    S = int(stride)
    out_dtype = x_ncl.dtype
    cd = jnp.dtype(compute_dtype)

    Mr = -(-K // S)                      # taps per phase (K zero-padded to Mr*S)
    K_pad = Mr * S
    SC = S * Cout
    SCp = _round_up(SC, 128)             # lane-dense output stores (cropped in wrapper)
    Lq = L + Mr - 1                      # per-phase output rows
    Lout_full = (L - 1) * S + K

    gran = 8 if cd.itemsize >= 4 else 16            # sublane granule (f32 / bf16 packing)
    Hh = _round_up(max(Mr - 1, 1), gran)            # halo rows, sublane aligned, Hh | T

    cb, ob = cd.itemsize, jnp.dtype(out_dtype).itemsize

    def est_bytes(t):
        # double-buffered pipeline blocks + in-kernel intermediates (x_ext, lhs, acc)
        blocks = 2 * (t * Cin * cb + Hh * Cin * cb + Mr * Cin * SCp * cb
                      + SCp * 4 + t * SCp * ob)
        scratch = (t + Hh) * Cin * cb + t * Mr * Cin * cb + t * SCp * 4
        return blocks + scratch

    vmem_cap = _vmem_capacity_bytes()
    budget = int(min(vmem_cap, 128 << 20) * 0.4)
    if tile_l is None:
        T = _round_up(min(int(max_tile), max(Lq, Hh)), Hh)
        while est_bytes(T) > budget and T > Hh:
            T = max(_round_up(T // 2, Hh), Hh)
    else:
        T = min(_round_up(max(int(tile_l), Hh), Hh), _round_up(max(Lq, Hh), Hh))
    n_tiles = pl.cdiv(Lq, T)
    Lp = n_tiles * T
    Th = T // Hh                          # halo block stride (Hh divides T)

    # ---- plain-JAX glue (layout only) ----
    # TODO(synk): the module keeps the PyTorch NCL interface, so the input/output
    # transposes stay as thin XLA glue; a channels-last surrounding model drops both.
    x_blc = jnp.transpose(x_ncl, (0, 2, 1)).astype(compute_dtype)       # (B, L, Cin)
    x_pad = jnp.pad(x_blc, ((0, 0), (0, Lp - L), (0, 0)))               # (B, Lp, Cin)

    # im2col weights: RHS[m*Cin + ci, r*Cout + co] = w[ci, co, m*S + r], K zero-padded.
    w_p = jnp.pad(weight, ((0, 0), (0, 0), (0, K_pad - K)))             # (Cin, Cout, Mr*S)
    w2 = jnp.transpose(w_p.reshape(Cin, Cout, Mr, S), (2, 0, 3, 1)).reshape(Mr * Cin, SC)
    w2 = jnp.pad(w2, ((0, 0), (0, SCp - SC))).astype(compute_dtype)     # (Mr*Cin, SCp)
    bias_w = jnp.pad(jnp.tile(bias.astype(jnp.float32).reshape(1, Cout), (1, S)),
                     ((0, 0), (0, SCp - SC)))                           # (1, SCp)

    vmem_limit = int(min(vmem_cap * 0.9,
                         max(3 * est_bytes(T) + (16 << 20), 24 << 20)))

    out = pl.pallas_call(
        _convtr_tile_kernel,
        out_shape=jax.ShapeDtypeStruct((B, Lp, SCp), out_dtype),
        grid=(B, n_tiles),
        in_specs=[
            # Halo rides on the SAME padded array (no gather, tiny aligned DMA).
            pl.BlockSpec((1, Hh, Cin),
                         lambda ib, it: (ib, jnp.maximum(it * Th - 1, 0), 0)),
            pl.BlockSpec((1, T, Cin), lambda ib, it: (ib, it, 0)),
            # TODO(synk): pipeline_mode=pl.Buffered(1) on the two constant blocks would
            # halve their VMEM footprint on v7x; omitted to keep lowering maximally safe.
            pl.BlockSpec((Mr * Cin, SCp), lambda ib, it: (0, 0)),
            pl.BlockSpec((1, SCp), lambda ib, it: (0, 0)),
        ],
        out_specs=pl.BlockSpec((1, T, SCp), lambda ib, it: (ib, it, 0)),
        compiler_params=pltpu.CompilerParams(
            dimension_semantics=("parallel", "parallel"),
            vmem_limit_bytes=vmem_limit),
        cost_estimate=pl.CostEstimate(
            flops=2 * B * Lp * Mr * Cin * SCp,
            transcendentals=0,
            bytes_accessed=int(B * Lp * Cin * cb + B * n_tiles * Hh * Cin * cb
                               + Mr * Cin * SCp * cb + SCp * 4
                               + B * Lp * SCp * ob)),
    )(x_pad, x_pad, w2, bias_w)                                         # (B, Lp, SCp)

    # Lane-dense output is already phase-interleaved: interleave = free reshape.
    y = out[:, :, :SC].reshape(B, Lp * S, Cout)[:, :Lout_full, :]
    y = jnp.transpose(y, (0, 2, 1))                                     # (B, Cout, Lout_full)
    if padding > 0:
        y = y[:, :, padding:Lout_full - padding]
    return y


def _reference_conv_transpose1d(x, w, b, stride, padding=0):
    """Direct numpy loop matching torch.nn.ConvTranspose1d semantics."""
    x, w, b = np.asarray(x), np.asarray(w), np.asarray(b)
    B, Cin, L = x.shape
    _, Cout, K = w.shape
    y = np.zeros((B, Cout, (L - 1) * stride + K), dtype=np.float64)
    for bb in range(B):
        for j in range(L):
            for k in range(K):
                y[bb, :, j * stride + k] += w[:, :, k].T @ x[bb, :, j]
    if padding > 0:
        y = y[:, :, padding:y.shape[2] - padding]
    return y + b[None, :, None]


if __name__ == "__main__":
    # NormConvTranspose1d(in_channels=4, out_channels=8, kernel_size=K, stride=S)
    B, Cin, Cout, L = 2, 4, 8, 16
    key = jax.random.PRNGKey(0)

    configs = [
        # exact algorithm check (f32 compute), tiny tiles -> exercises halo + clamped tile 0
        dict(K=4, stride=2, padding=0, compute_dtype=jnp.float32, tile_l=8, tol=2e-4),
        # K % stride != 0, multi-tile, f32 compute
        dict(K=5, stride=2, padding=0, compute_dtype=jnp.float32, tile_l=8, tol=2e-4),
        # larger stride, K % stride != 0, padding crop, multi-tile f32
        dict(K=7, stride=3, padding=2, compute_dtype=jnp.float32, tile_l=16, tol=2e-4),
        # bf16 MXU inputs + f32 accumulate, auto tile size, padding crop
        dict(K=4, stride=2, padding=1, compute_dtype=jnp.bfloat16, tile_l=None, tol=5e-2),
    ]

    for cfg in configs:
        K, stride, padding = cfg["K"], cfg["stride"], cfg["padding"]
        key, kx, kw, kb = jax.random.split(key, 4)
        x = jax.random.normal(kx, (B, Cin, L), dtype=jnp.float32)
        fan = Cin * K
        weight = jax.random.normal(kw, (Cin, Cout, K), dtype=jnp.float32) / np.sqrt(fan)
        bias = jax.random.normal(kb, (Cout,), dtype=jnp.float32) * 0.1

        y = norm_conv_transpose1d(x, weight, bias, stride=stride, padding=padding,
                                  tile_l=cfg["tile_l"],
                                  compute_dtype=cfg["compute_dtype"])
        y = jax.block_until_ready(y)

        y_ref = _reference_conv_transpose1d(x, weight, bias, stride, padding)
        assert y.shape == y_ref.shape, (cfg, y.shape, y_ref.shape)
        tol = cfg["tol"]
        assert np.allclose(np.asarray(y, dtype=np.float64), y_ref,
                           rtol=tol, atol=tol), cfg

    print("KERNEL_OK")
</pallas_src>

<mosaic_0001>
module attributes {stable_mosaic.version = 11 : i64} {
  func.func @_convtr_tile_kernel(%arg0: i32, %arg1: i32, %arg2: memref<1x8x4xf32, #tpu.memory_space<vmem>>, %arg3: memref<1x8x4xf32, #tpu.memory_space<vmem>>, %arg4: memref<8x128xf32, #tpu.memory_space<vmem>>, %arg5: memref<1x128xf32, #tpu.memory_space<vmem>>, %arg6: memref<1x8x128xf32, #tpu.memory_space<vmem>>) attributes {dimension_semantics = [#tpu.dimension_semantics<parallel>, #tpu.dimension_semantics<parallel>], iteration_bounds = array<i64: 2, 3>, scalar_prefetch = 0 : i64, scratch_operands = 0 : i64, tpu.core_type = #tpu.core_type<tc>, window_params = [{transform_indices = @transform_0, window_bounds = array<i64: 1, 8, 4>}, {transform_indices = @transform_1, window_bounds = array<i64: 1, 8, 4>}, {pipeline_mode = #tpu.pipeline_mode<synchronous>, transform_indices = @transform_2, window_bounds = array<i64: 8, 128>}, {pipeline_mode = #tpu.pipeline_mode<synchronous>, transform_indices = @transform_3, window_bounds = array<i64: 1, 128>}, {transform_indices = @transform_4, window_bounds = array<i64: 1, 8, 128>}]} {
    %c0 = arith.constant 0 : index
    %c0_0 = arith.constant 0 : index
    %c0_1 = arith.constant 0 : index
    %0 = vector.load %arg3[%c0, %c0_0, %c0_1] : memref<1x8x4xf32, #tpu.memory_space<vmem>>, vector<1x8x4xf32>
    %1 = vector.shape_cast %0 : vector<1x8x4xf32> to vector<8x4xf32>
    %c0_2 = arith.constant 0 : index
    %c0_3 = arith.constant 0 : index
    %c0_4 = arith.constant 0 : index
    %2 = vector.load %arg2[%c0_2, %c0_3, %c0_4] : memref<1x8x4xf32, #tpu.memory_space<vmem>>, vector<1x8x4xf32>
    %3 = vector.shape_cast %2 : vector<1x8x4xf32> to vector<8x4xf32>
    %c0_i32 = arith.constant 0 : i32
    %4 = arith.cmpi eq, %arg1, %c0_i32 : i32
    %cst = arith.constant 0.000000e+00 : f32
    %5 = vector.broadcast %cst : f32 to vector<8x4xf32>
    %6 = arith.select %4, %5, %3 : vector<8x4xf32>
    %7 = tpu.concatenate %6, %1 in 0 : vector<8x4xf32>, vector<8x4xf32> -> vector<16x4xf32>
    %8 = vector.extract_strided_slice %7 {offsets = [8, 0], sizes = [8, 4], strides = [1, 1]} : vector<16x4xf32> to vector<8x4xf32>
    %9 = vector.extract_strided_slice %7 {offsets = [7, 0], sizes = [8, 4], strides = [1, 1]} : vector<16x4xf32> to vector<8x4xf32>
    %10 = tpu.concatenate %8, %9 in 1 : vector<8x4xf32>, vector<8x4xf32> -> vector<8x8xf32>
    %c0_5 = arith.constant 0 : index
    %c0_6 = arith.constant 0 : index
    %11 = vector.load %arg4[%c0_5, %c0_6] : memref<8x128xf32, #tpu.memory_space<vmem>>, vector<8x128xf32>
    %cst_7 = arith.constant dense<0.000000e+00> : vector<8x128xf32>
    %12 = tpu.matmul %10, %11, %cst_7 {dimension_numbers = #tpu.dot_dimension_numbers<[1], [0], [0], [1], [0, 0, 1, 1], [], []>} : vector<8x8xf32>, vector<8x128xf32>, vector<8x128xf32> -> vector<8x128xf32>
    %c0_8 = arith.constant 0 : index
    %c0_9 = arith.constant 0 : index
    %13 = vector.load %arg5[%c0_8, %c0_9] : memref<1x128xf32, #tpu.memory_space<vmem>>, vector<1x128xf32>
    %14 = vector.broadcast %13 : vector<1x128xf32> to vector<8x128xf32>
    %15 = arith.addf %12, %14 : vector<8x128xf32>
    %c0_10 = arith.constant 0 : index
    %c0_11 = arith.constant 0 : index
    %c0_12 = arith.constant 0 : index
    %16 = vector.load %arg6[%c0_10, %c0_11, %c0_12] : memref<1x8x128xf32, #tpu.memory_space<vmem>>, vector<1x8x128xf32>
    %17 = vector.shape_cast %16 : vector<1x8x128xf32> to vector<8x128xf32>
    %18 = vector.shape_cast %15 : vector<8x128xf32> to vector<1x8x128xf32>
    tpu.vector_store %arg6[%c0_10, %c0_11, %c0_12], %18 {strides = array<i32>} : memref<1x8x128xf32, #tpu.memory_space<vmem>>, vector<1x8x128xf32>,
    return
  }
  func.func @transform_0(%arg0: i32, %arg1: i32) -> (i32, i32, i32) {
    %c1_i32 = arith.constant 1 : i32
    %0 = arith.muli %arg1, %c1_i32 : i32
    %c1_i32_0 = arith.constant 1 : i32
    %1 = arith.subi %0, %c1_i32_0 : i32
    %c0_i32 = arith.constant 0 : i32
    %2 = arith.maxsi %1, %c0_i32 : i32
    %c0_i32_1 = arith.constant 0 : i32
    %c0_i32_2 = arith.constant 0 : i32
    return %arg0, %2, %c0_i32_1 : i32, i32, i32
  }
  func.func @transform_1(%arg0: i32, %arg1: i32) -> (i32, i32, i32) {
    %c0_i32 = arith.constant 0 : i32
    %c0_i32_0 = arith.constant 0 : i32
    return %arg0, %arg1, %c0_i32 : i32, i32, i32
  }
  func.func @transform_2(%arg0: i32, %arg1: i32) -> (i32, i32) {
    %c0_i32 = arith.constant 0 : i32
    %c0_i32_0 = arith.constant 0 : i32
    %c0_i32_1 = arith.constant 0 : i32
    return %c0_i32, %c0_i32_0 : i32, i32
  }
  func.func @transform_3(%arg0: i32, %arg1: i32) -> (i32, i32) {
    %c0_i32 = arith.constant 0 : i32
    %c0_i32_0 = arith.constant 0 : i32
    %c0_i32_1 = arith.constant 0 : i32
    return %c0_i32, %c0_i32_0 : i32, i32
  }
  func.func @transform_4(%arg0: i32, %arg1: i32) -> (i32, i32, i32) {
    %c0_i32 = arith.constant 0 : i32
    %c0_i32_0 = arith.constant 0 : i32
    return %arg0, %arg1, %c0_i32 : i32, i32, i32
  }
}

</mosaic_0001>

<llo_original>
// kernel: tpu_custom_call.1
$region0: #{tpu_custom_call.1}
  #allocation0 [shape = 'u32[]', space=smem, size = 0x4, offset = 0x4, fixed_abs, tag = 'smem constant byte address 0x4 - core index']
  #allocation1 [shape = 'u32[144,128]{1,0:T(1,128)}', space=vmem, size = 0x12000, scoped, tag = 'internal scratch']
  %s0 = inlined_call_operand.vmem [shape: f32[2,24,4], index: 0, kind: input, shape index: {}]
  %s1 = inlined_call_operand.vmem [shape: f32[2,24,4], index: 1, kind: input, shape index: {}]
  %s2 = inlined_call_operand.vmem [shape: f32[8,128], index: 2, kind: input, shape index: {}]
  %s3 = inlined_call_operand.vmem [shape: f32[1,128], index: 3, kind: input, shape index: {}]
  %s4 = inlined_call_operand.hbm [shape: f32[2,24,128], index: 4, kind: output, shape index: {}]
  %s5 = sld [smem:[#allocation0]]
  $region49: #{tpu_custom_call.1} parent=0
    _
  %s7 = ssub.s32 1, %s5
  %s8 = scalar_select 0, %s7, %s5
  $region1: #{tpu_custom_call.1} parent=0
    #allocation2 [shape = 'u8[8192]{0}', space=vmem, size = 0x2000, scoped, tag = 'output window, operand 0']
    #allocation3 [shape = 's32[2]{0}', space=sflag, size = 0x8, scoped, tag = 'scoped memory for tpu_custom_call.1']
    %9 = vsyncpa [#allocation3], 0
    %s10 = scalar_lea.sflag [#allocation3], 1
    %11 = vsyncpa %s10, 0
    loop: start=0, step=1, limit=8
    $region2: #{tpu_custom_call.1} parent=1 // loop_pre_header
      _
    $region3: #{tpu_custom_call.1} parent=1 // loop_header
      %s13 = sphi 0, %s17
      %p14 = scmp.ge.s32.totalorder %s13, 8
      %s20 = sphi 0, %s32
      %s21 = sphi 0, %s28
      %s22 = sphi 0, %s20
      %s23 = sphi 0, %s21
      %s24 = sphi 0, %s22
      %s25 = sphi 0, %s23
      %s43 = sphi 0, %s45
      %s46 = sphi 0, %s43
      %s47 = sphi 0, %s46
      %s63 = sphi 0, %s47
      %s71 = sphi 0, %s73
      %s74 = sphi 0, %s71
      %s75 = sphi 0, %s74
      %s91 = sphi 0, %s75
      %s95 = sphi 0, %s95
      %s97 = sphi 0, %s95
      %s98 = sphi 0, %s97
      %s112 = sphi 0, %s98
      %s116 = sphi 0, %s116
      %s118 = sphi 0, %s116
      %s119 = sphi 0, %s118
      %s133 = sphi 0, %s119
      %s141 = sphi 0, %s143
      %s144 = sphi 0, %s141
      %s145 = sphi 0, %s144
      %s161 = sphi 0, %s145
    $region4: #{tpu_custom_call.1} parent=1 // loop_header_branch
      %16 = sbr.rel (%p14) target = $region8
    $region5: #{tpu_custom_call.1} parent=1 // loop_body
      %s18 = ssub.s32 %s13, 1
      %s19 = ssub.s32 %s13, 2
      %s26 = sadd.s32 1, %s21
      %p27 = scmp.ge.s32.totalorder %s26, 3
      %s28 = scalar_select %p27, 0, %s26
      %s29 = sadd.s32 1, %s20
      %s30 = scalar_select %p27, %s29, %s20
      %p31 = scmp.ge.s32.totalorder %s30, 2
      %s32 = scalar_select %p31, 0, %s30
      %s33 = ssub.s32 %s21, 1
      %p34 = scmp.gt.s32.totalorder %s33, 0
      %s35 = scalar_select %p34, %s33, 0
      %s36 = ssub.s32 %s28, 1
      %p37 = scmp.gt.s32.totalorder %s36, 0
      %s38 = scalar_select %p37, %s36, 0
      %s39 = ssub.s32 %s20, %s32
      %s40 = ssub.s32 %s35, %s38
      %s41 = sor.u32 %s39, %s40
      %p42 = scmp.eq.s32.totalorder %s41, 0
      %s44 = sadd.s32 %s43, 1
      %s45 = scalar_select %p42, %s43, %s44
      %p48 = pneg %p42
      %p49 = scmp.eq.s32.totalorder %s13, 5
      %p50 = por %p48, %p49
      %p51 = scmp.ne.s32.totalorder %s43, %s46
      %p52 = scmp.eq.s32.totalorder %s13, 0
      %p53 = por %p51, %p52
      %p54 = scmp.ne.s32.totalorder %s43, %s46
      %p55 = scmp.eq.s32.totalorder %s18, 5
      %p56 = por %p54, %p55
      %p57 = scmp.ne.s32.totalorder %s46, %s47
      %p58 = scmp.eq.s32.totalorder %s18, 0
      %p59 = por %p57, %p58
      %p60 = scmp.ne.s32.totalorder %s46, %s47
      %p61 = scmp.eq.s32.totalorder %s19, 5
      %p62 = por %p60, %p61
      %p64 = scmp.ne.s32.totalorder %s47, %s63
      %p65 = scmp.eq.s32.totalorder %s19, 0
      %p66 = por %p64, %p65
      %s67 = ssub.s32 %s20, %s32
      %s68 = ssub.s32 %s21, %s28
      %s69 = sor.u32 %s67, %s68
      %p70 = scmp.eq.s32.totalorder %s69, 0
      %s72 = sadd.s32 %s71, 1
      %s73 = scalar_select %p70, %s71, %s72
      %p76 = pneg %p70
      %p77 = scmp.eq.s32.totalorder %s13, 5
      %p78 = por %p76, %p77
      %p79 = scmp.ne.s32.totalorder %s71, %s74
      %p80 = scmp.eq.s32.totalorder %s13, 0
      %p81 = por %p79, %p80
      %p82 = scmp.ne.s32.totalorder %s71, %s74
      %p83 = scmp.eq.s32.totalorder %s18, 5
      %p84 = por %p82, %p83
      %p85 = scmp.ne.s32.totalorder %s74, %s75
      %p86 = scmp.eq.s32.totalorder %s18, 0
      %p87 = por %p85, %p86
      %p88 = scmp.ne.s32.totalorder %s74, %s75
      %p89 = scmp.eq.s32.totalorder %s19, 5
      %p90 = por %p88, %p89
      %p92 = scmp.ne.s32.totalorder %s75, %s91
      %p93 = scmp.eq.s32.totalorder %s19, 0
      %p94 = por %p92, %p93
      %s96 = sadd.s32 %s95, 1
      %p99 = scmp.eq.s32.totalorder %s13, 5
      %p100 = scmp.ne.s32.totalorder %s95, %s97
      %p101 = scmp.eq.s32.totalorder %s13, 0
      %p102 = por %p100, %p101
      %p103 = scmp.ne.s32.totalorder %s95, %s97
      %p104 = scmp.eq.s32.totalorder %s18, 5
      %p105 = por %p103, %p104
      %p106 = scmp.ne.s32.totalorder %s97, %s98
      %p107 = scmp.eq.s32.totalorder %s18, 0
      %p108 = por %p106, %p107
      %p109 = scmp.ne.s32.totalorder %s97, %s98
      %p110 = scmp.eq.s32.totalorder %s19, 5
      %p111 = por %p109, %p110
      %p113 = scmp.ne.s32.totalorder %s98, %s112
      %p114 = scmp.eq.s32.totalorder %s19, 0
      %p115 = por %p113, %p114
      %s117 = sadd.s32 %s116, 1
      %p120 = scmp.eq.s32.totalorder %s13, 5
      %p121 = scmp.ne.s32.totalorder %s116, %s118
      %p122 = scmp.eq.s32.totalorder %s13, 0
      %p123 = por %p121, %p122
      %p124 = scmp.ne.s32.totalorder %s116, %s118
      %p125 = scmp.eq.s32.totalorder %s18, 5
      %p126 = por %p124, %p125
      %p127 = scmp.ne.s32.totalorder %s118, %s119
      %p128 = scmp.eq.s32.totalorder %s18, 0
      %p129 = por %p127, %p128
      %p130 = scmp.ne.s32.totalorder %s118, %s119
      %p131 = scmp.eq.s32.totalorder %s19, 5
      %p132 = por %p130, %p131
      %p134 = scmp.ne.s32.totalorder %s119, %s133
      %p135 = scmp.eq.s32.totalorder %s19, 0
      %p136 = por %p134, %p135
      %s137 = ssub.s32 %s20, %s32
      %s138 = ssub.s32 %s21, %s28
      %s139 = sor.u32 %s137, %s138
      %p140 = scmp.eq.s32.totalorder %s139, 0
      %s142 = sadd.s32 %s141, 1
      %s143 = scalar_select %p140, %s141, %s142
      %p146 = pneg %p140
      %p147 = scmp.eq.s32.totalorder %s13, 5
      %p148 = por %p146, %p147
      %p149 = scmp.ne.s32.totalorder %s141, %s144
      %p150 = scmp.eq.s32.totalorder %s13, 0
      %p151 = por %p149, %p150
      %p152 = scmp.ne.s32.totalorder %s141, %s144
      %p153 = scmp.eq.s32.totalorder %s18, 5
      %p154 = por %p152, %p153
      %p155 = scmp.ne.s32.totalorder %s144, %s145
      %p156 = scmp.eq.s32.totalorder %s18, 0
      %p157 = por %p155, %p156
      %p158 = scmp.ne.s32.totalorder %s144, %s145
      %p159 = scmp.eq.s32.totalorder %s19, 5
      %p160 = por %p158, %p159
      %p162 = scmp.ne.s32.totalorder %s145, %s161
      %p163 = scmp.eq.s32.totalorder %s19, 0
      %p164 = por %p162, %p163
      %p165 = scmp.le.s32.totalorder 1, %s13
      %p166 = scmp.lt.s32.totalorder %s13, 7
      %p167 = pnand %p165, %p166
      %p168 = pneg %p167
      // Predicated region
      $region9: #{tpu_custom_call.1} parent=5 // pred_check
        _
      $region10: #{tpu_custom_call.1} parent=5 // pred_check_branch
        %170 = sbr.rel (%p167) target = $region12
      $region11: #{tpu_custom_call.1} parent=5 // pred_region
        %s171 = ssub.s32 %s13, 1
        // Predicated region
        $region13: #{tpu_custom_call.1} parent=11 // pred_check
          %p172 = pneg %p108
        $region14: #{tpu_custom_call.1} parent=11 // pred_check_branch
          %174 = sbr.rel (%p172) target = $region16
        $region15: #{tpu_custom_call.1} parent=11 // pred_region
          _
        $region16: #{tpu_custom_call.1} parent=11 // pred_fallthru
          _
        // Predicated region
        $region17: #{tpu_custom_call.1} parent=11 // pred_check
          %p175 = pneg %p129
        $region18: #{tpu_custom_call.1} parent=11 // pred_check_branch
          %177 = sbr.rel (%p175) target = $region20
        $region19: #{tpu_custom_call.1} parent=11 // pred_region
          _
        $region20: #{tpu_custom_call.1} parent=11 // pred_fallthru
          _
      $region12: #{tpu_custom_call.1} parent=5 // pred_fallthru
        _
      %p178 = scmp.lt.s32.totalorder %s13, 6
      // Predicated region
      $region21: #{tpu_custom_call.1} parent=5 // pred_check
        %p179 = pneg %p178
      $region22: #{tpu_custom_call.1} parent=5 // pred_check_branch
        %181 = sbr.rel (%p179) target = $region24
      $region23: #{tpu_custom_call.1} parent=5 // pred_region
        // Predicated region
        $region25: #{tpu_custom_call.1} parent=23 // pred_check
          %p182 = pneg %p53
        $region26: #{tpu_custom_call.1} parent=23 // pred_check_branch
          %184 = sbr.rel (%p182) target = $region28
        $region27: #{tpu_custom_call.1} parent=23 // pred_region
          %s185 = ssub.s32 %s21, 1
          %p186 = scmp.gt.s32.totalorder %s185, 0
          %s187 = scalar_select %p186, %s185, 0
          %p188 = scmp.lt.s32.totalorder %s20, 1
          %s189 = scalar_select %p188, %s20, 1
          %p190 = scmp.lt.s32.totalorder %s187, 2
          %s191 = scalar_select %p190, %s187, 2
          %s192 = smul.addr %s189, 3
          %s193 = sadd.s32 %s191, %s192
          %s194 = smul.addr %s193, 8
          %s195 = scalar_lea.vmem %s0, %s194
          %s196 = ssub.s32 %s21, 1
          %p197 = scmp.gt.s32.totalorder %s196, 0
          %s198 = scalar_select %p197, %s196, 0
        $region28: #{tpu_custom_call.1} parent=23 // pred_fallthru
          _
        // Predicated region
        $region29: #{tpu_custom_call.1} parent=23 // pred_check
          %p199 = pneg %p81
        $region30: #{tpu_custom_call.1} parent=23 // pred_check_branch
          %201 = sbr.rel (%p199) target = $region32
        $region31: #{tpu_custom_call.1} parent=23 // pred_region
          %p202 = scmp.lt.s32.totalorder %s20, 1
          %s203 = scalar_select %p202, %s20, 1
          %p204 = scmp.lt.s32.totalorder %s21, 2
          %s205 = scalar_select %p204, %s21, 2
          %s206 = smul.addr %s203, 3
          %s207 = sadd.s32 %s205, %s206
          %s208 = smul.addr %s207, 8
          %s209 = scalar_lea.vmem %s1, %s208
        $region32: #{tpu_custom_call.1} parent=23 // pred_fallthru
          _
      $region24: #{tpu_custom_call.1} parent=5 // pred_fallthru
        _
      %p210 = scmp.le.s32.totalorder 1, %s13
      %p211 = scmp.lt.s32.totalorder %s13, 7
      %p212 = pnand %p210, %p211
      %p213 = pneg %p212
      // Predicated region
      $region33: #{tpu_custom_call.1} parent=5 // pred_check
        _
      $region34: #{tpu_custom_call.1} parent=5 // pred_check_branch
        %215 = sbr.rel (%p212) target = $region36
      $region35: #{tpu_custom_call.1} parent=5 // pred_region
        %s216 = ssub.s32 %s13, 1
        %s217 = ssub.s32 %s23, 1
        %p218 = scmp.gt.s32.totalorder %s217, 0
        %s219 = scalar_select %p218, %s217, 0
        %p220 = scmp.lt.s32.totalorder %s22, 1
        %s221 = scalar_select %p220, %s22, 1
        %p222 = scmp.lt.s32.totalorder %s219, 2
        %s223 = scalar_select %p222, %s219, 2
        %s224 = smul.addr %s221, 3
        %s225 = sadd.s32 %s223, %s224
        %s226 = smul.addr %s225, 8
        %s227 = scalar_lea.vmem %s0, %s226
        %p228 = pneg %p59
        %p229 = pneg %p56
        %p230 = scmp.lt.s32.totalorder %s22, 1
        %s231 = scalar_select %p230, %s22, 1
        %p232 = scmp.lt.s32.totalorder %s23, 2
        %s233 = scalar_select %p232, %s23, 2
        %s234 = smul.addr %s231, 3
        %s235 = sadd.s32 %s233, %s234
        %s236 = smul.addr %s235, 8
        %s237 = scalar_lea.vmem %s1, %s236
        %p238 = pneg %p87
        %p239 = pneg %p84
        %p240 = pneg %p108
        %p241 = pneg %p105
        %p242 = pneg %p129
        %p243 = pneg %p126
        %p244 = pneg %p157
        %p245 = pneg %p154
        %s246 = sand.u32 %s144, 1
        %s247 = scalar_lea.sflag [#allocation3], %s246
        %s248 = sand.u32 %s144, 1
        %s249 = smul.addr %s248, 8
        %s250 = scalar_lea.vmem [#allocation2], %s249
        %s251 = ssub.s32 %s23, 1
        %p252 = scmp.gt.s32.totalorder %s251, 0
        %s253 = scalar_select %p252, %s251, 0
        %p254 = scmp.lt.s32.totalorder %s22, 1
        %s255 = scalar_select %p254, %s22, 1
        %p256 = scmp.lt.s32.totalorder %s253, 2
        %s257 = scalar_select %p256, %s253, 2
        %s258 = smul.addr %s255, 3
        %s259 = sadd.s32 %s257, %s258
        %s260 = smul.addr %s259, 8
        %s261 = scalar_lea.vmem %s0, %s260
        %s262 = ssub.s32 %s23, 1
        %p263 = scmp.gt.s32.totalorder %s262, 0
        %s264 = scalar_select %p263, %s262, 0
        %p265 = scmp.lt.s32.totalorder %s22, 1
        %s266 = scalar_select %p265, %s22, 1
        %p267 = scmp.lt.s32.totalorder %s23, 2
        %s268 = scalar_select %p267, %s23, 2
        %s269 = smul.addr %s266, 3
        %s270 = sadd.s32 %s268, %s269
        %s271 = smul.addr %s270, 8
        %s272 = scalar_lea.vmem %s1, %s271
        %v273 = vld [vmem:[%s272] sm:$0xff]
        %v274 = vld [vmem:[%s261] sm:$0xff]
        %p275 = scmp.eq.s32.totalorder %s23, 0
        %s276 = scalar_select %p275, 1, 0
        %v277 = vstv %s276
        %vm278 = vcmp.eq.s32.totalorder %v277, 1
        %v279 = vsel %vm278, 0.0, %v274
        %vm282 = vcmask 1040384
        %v283 = vrot.slane %v279, 7
        %v284 = vrot.slane %v273, 7
        %v285 = vsel %vm282, %v283, %v284
        %286 = vrot.lane.b32.xlu0 %v285, 4
        %v287 = vpop.permute.xlu0 %286
        %vm289 = vcmask 31744
        %v290 = vsel %vm289, %v273, %v287
        %v291 = vld [vmem:[%s2] sm:$0xff]
        %v292 = vld [vmem:[%s3] sm:$0x1]
        %v294 = vlaneseq
        %v295 = vshrl.u32 %v294, 7
        %v296 = vsub.s32 0, %v295
        %v297 = vrot.slane %v292, %v296
        %vm299 = vcmask 64512
        %v301 = vsel %vm299, %v290, 0
        %303 = vmatprep.subr.mxu0 0.0
        %304 = vmatpush1.msra.mxu0 %v291
        %305 = vmatprep.subr.mxu0 0.0
        %306 = vmatpush1.msra.mxu0 0.0
        %307 = vmatprep.subr.mxu0 0.0
        %308 = vmatpush1.msra.mxu0 0.0
        %309 = vmatprep.subr.mxu0 0.0
        %310 = vmatpush1.msra.mxu0 0.0
        %311 = vmatprep.subr.mxu0 0.0
        %312 = vmatpush1.msra.mxu0 0.0
        %313 = vmatprep.subr.mxu0 0.0
        %314 = vmatpush1.msra.mxu0 0.0
        %315 = vmatprep.subr.mxu0 0.0
        %316 = vmatpush1.msra.mxu0 0.0
        %317 = vmatprep.subr.mxu0 0.0
        %318 = vmatpush1.msra.mxu0 0.0
        %319 = vmatprep.subr.mxu0 0.0
        %320 = vmatpush1.msra.mxu0 0.0
        %321 = vmatprep.subr.mxu0 0.0
        %322 = vmatpush1.msra.mxu0 0.0
        %323 = vmatprep.subr.mxu0 0.0
        %324 = vmatpush1.msra.mxu0 0.0
        %325 = vmatprep.subr.mxu0 0.0
        %326 = vmatpush1.msra.mxu0 0.0
        %327 = vmatprep.subr.mxu0 0.0
        %328 = vmatpush1.msra.mxu0 0.0
        %329 = vmatprep.subr.mxu0 0.0
        %330 = vmatpush1.msra.mxu0 0.0
        %331 = vmatprep.subr.mxu0 0.0
        %332 = vmatpush1.msra.mxu0 0.0
        %333 = vmatprep.subr.mxu0 0.0
        %334 = vmatpush1.msra.mxu0 0.0
        %335 = vmatprep.subr.mxu0 0.0
        %336 = vmatpush1.msra.mxu0 0.0
        %337 = vmatprep.subr.mxu0 0.0
        %338 = vmatpush1.msra.mxu0 0.0
        %339 = vmatprep.subr.mxu0 0.0
        %340 = vmatpush1.msra.mxu0 0.0
        %341 = vmatprep.subr.mxu0 0.0
        %342 = vmatpush1.msra.mxu0 0.0
        %343 = vmatprep.subr.mxu0 0.0
        %344 = vmatpush1.msra.mxu0 0.0
        %345 = vmatprep.subr.mxu0 0.0
        %346 = vmatpush1.msra.mxu0 0.0
        %347 = vmatprep.subr.mxu0 0.0
        %348 = vmatpush1.msra.mxu0 0.0
        %349 = vmatprep.subr.mxu0 0.0
        %350 = vmatpush1.msra.mxu0 0.0
        %351 = vmatprep.subr.mxu0 0.0
        %352 = vmatpush1.msra.mxu0 0.0
        %353 = vmatprep.subr.mxu0 0.0
        %354 = vmatpush1.msra.mxu0 0.0
        %355 = vmatprep.subr.mxu0 0.0
        %356 = vmatpush1.msra.mxu0 0.0
        %357 = vmatprep.subr.mxu0 0.0
        %358 = vmatpush1.msra.mxu0 0.0
        %359 = vmatprep.subr.mxu0 0.0
        %360 = vmatpush1.msra.mxu0 0.0
        %361 = vmatprep.subr.mxu0 0.0
        %362 = vmatpush1.msra.mxu0 0.0
        %363 = vmatprep.subr.mxu0 0.0
        %364 = vmatpush1.msra.mxu0 0.0
        %365 = vmatprep.subr.mxu0 0.0
        %366 = vmatpush1.msra.mxu0 0.0
        %367 = vmatprep.mubr.f32.mxu0 0.0
        %368 = vmatmul.mubr.f32.gmra.mrb[0].mxu0 %v301
        %v369 = vpop.f32.mrb[0].mxu0
        %v370 = vadd.f32 %v297, %v369
        %v371 = vpop.f32.mrb[0].mxu0
        %372 = vdwg.mxu0
        %373 = vst [vmem:[%s250] sm:$0xff] %v370
        %s374 = sand.u32 %s144, 1
        %s375 = scalar_lea.sflag [#allocation3], %s374
        %s376 = sand.u32 %s144, 1
        %s377 = smul.addr %s376, 8
        %s378 = scalar_lea.vmem [#allocation2], %s377
        // Predicated region
        $region37: #{tpu_custom_call.1} parent=35 // pred_check
          %p379 = pneg %p154
        $region38: #{tpu_custom_call.1} parent=35 // pred_check_branch
          %381 = sbr.rel (%p379) target = $region40
        $region39: #{tpu_custom_call.1} parent=35 // pred_region
          %s383 = ssub.s32 128, 128
          %384 = vsyncadd %s375, %s383
          %s385 = smul.addr %s22, 3
          %s386 = sadd.s32 %s23, %s385
          %s387 = smul.addr %s386, 128
          %s388 = scalar_lea.hbm %s4, %s387
          %s390 = sshll.u32 %s378, 4
          %s391 = int_to_ptr.vmem [resolvable:$true] %s390
          %393 = dma.vmem_to_hbm [thread:$0]  %s391, 128, %s388, %s375
        $region40: #{tpu_custom_call.1} parent=35 // pred_fallthru
          _
      $region36: #{tpu_custom_call.1} parent=5 // pred_fallthru
        _
      %p394 = scmp.le.s32.totalorder 2, %s13
      // Predicated region
      $region41: #{tpu_custom_call.1} parent=5 // pred_check
        %p395 = pneg %p394
      $region42: #{tpu_custom_call.1} parent=5 // pred_check_branch
        %397 = sbr.rel (%p395) target = $region44
      $region43: #{tpu_custom_call.1} parent=5 // pred_region
        %s398 = ssub.s32 %s13, 2
        // Predicated region
        $region45: #{tpu_custom_call.1} parent=43 // pred_check
          %p399 = pneg %p160
        $region46: #{tpu_custom_call.1} parent=43 // pred_check_branch
          %401 = sbr.rel (%p399) target = $region48
        $region47: #{tpu_custom_call.1} parent=43 // pred_region
          %s402 = sand.u32 %s145, 1
          %s403 = scalar_lea.sflag [#allocation3], %s402
          %s404 = sand.u32 %s145, 1
          %s405 = smul.addr %s404, 8
          %s406 = scalar_lea.vmem [#allocation2], %s405
          %407 = dma.done %s403, 128
        $region48: #{tpu_custom_call.1} parent=43 // pred_fallthru
          _
      $region44: #{tpu_custom_call.1} parent=5 // pred_fallthru
        _
    $region6: #{tpu_custom_call.1} parent=1 // loop_footer
      %s17 = sadd.s32 1, %s13
    $region7: #{tpu_custom_call.1} parent=1 // loop_footer_branch
      %12 = sbr.rel target = $region3
    $region8: #{tpu_custom_call.1} parent=1 // loop_exit
      _
    %408 = vsyncpa [#allocation3], 1
    %s409 = scalar_lea.sflag [#allocation3], 1
    %410 = vsyncpa %s409, 1

</llo_original>
